<compile_context>
chip_gen: v6e
topology: v6e:2x2x1
jax: 0.10.0
libtpu: 0.0.40
codegen_flags: <defaults>
</compile_context>

<pallas_src>
import jax
import jax.numpy as jnp
from jax.experimental import pallas as pl
from jax.experimental.pallas import tpu as pltpu


_LANE = 128
_ACT_VMEM_BUDGET = 16 << 20   # bytes reserved for live activation tiles (v7x-safe)


def _fold_kernel(seed_ref, feat1_ref, feat2_ref,
                 w1s_ref, w2_ref, b2_ref,
                 wf_ref, w4_ref, b4_ref,
                 w5_ref, b5_ref,
                 out_ref):
    f32 = jnp.float32
    cd = w2_ref.dtype                       # matmul compute dtype (bf16)

    seed = seed_ref[...]                    # (2, TN)  grid coords, N on lanes
    feat1 = feat1_ref[0]                    # (H, 1)   per-batch feature term (bias folded in)
    feat2 = feat2_ref[0]                    # (H, 1)

    # folding1 layer 1, seed branch: K=2 contraction is MXU-hostile -> two VPU
    # broadcast multiply-adds instead of a jnp.dot.
    w1s = w1s_ref[...]                      # (H, 2) f32
    h = w1s[:, 0:1] * seed[0:1, :] + w1s[:, 1:2] * seed[1:2, :] + feat1
    h = jnp.maximum(h, 0.0)                                                       # (H, TN)

    # folding1 layer 2 (layer 3 is fused into folding2 layer 1).
    h = jnp.dot(w2_ref[...], h.astype(cd), preferred_element_type=f32) + b2_ref[...]
    h = jnp.maximum(h, 0.0)                                                       # (H/2, TN)

    # folding2
    g = jnp.dot(wf_ref[...], h.astype(cd), preferred_element_type=f32) + feat2
    g = jnp.maximum(g, 0.0)                                                       # (H, TN)
    g = jnp.dot(w4_ref[...], g.astype(cd), preferred_element_type=f32) + b4_ref[...]
    g = jnp.maximum(g, 0.0)                                                       # (H/2, TN)
    out = jnp.dot(w5_ref[...], g.astype(cd), preferred_element_type=f32) + b5_ref[...]   # (3, TN)

    out_ref[...] = out[None].astype(out_ref.dtype)      # (1, 3, TN) lane-dense store


def _prepare_params(params, compute_dtype=jnp.bfloat16):
    """Fold BN (eval) into the convs, split the first-layer weights into
    seed/fd vs feature branches, fuse folding1's last conv into folding2's
    first conv, transpose to channels-first, and cast MXU weights to bf16."""
    (w11, b11, s11, t11, w12, b12, s12, t12, w13, b13,
     w21, b21, s21, t21, w22, b22, s22, t22, w23, b23) = params

    def bn_fold(w, b, s, t):                 # conv (cin,cout),(1,cout); BN (1,cout)
        return w * s, b * s + t

    w11, b11 = bn_fold(w11, b11, s11, t11)
    w12, b12 = bn_fold(w12, b12, s12, t12)
    w21, b21 = bn_fold(w21, b21, s21, t21)
    w22, b22 = bn_fold(w22, b22, s22, t22)

    w11_seed, w11_feat = w11[:2], w11[2:]    # (2, H), (Cin, H)
    w21_fd, w21_feat = w21[:3], w21[3:]      # (3, H), (Cin, H)

    # No nonlinearity between folding1's last conv and folding2's first conv:
    # fold w13/b13 straight into folding2's fd-branch of layer 1.
    w_fused = w13 @ w21_fd                   # (H/2, H)
    b_fused = b13 @ w21_fd + b21             # (1, H)

    col = lambda v: v.reshape(-1, 1)
    cd = compute_dtype
    feat_params = (w11_feat, b11, w21_feat, b_fused)        # f32, wrapper matvecs
    kernel_weights = (
        w11_seed.T,                                         # (H, 2)    f32 (VPU)
        w12.T.astype(cd), col(b12),                         # (H/2, H)  bf16, (H/2,1) f32
        w_fused.T.astype(cd),                               # (H, H/2)  bf16
        w22.T.astype(cd), col(b22),                         # (H/2, H)  bf16, (H/2,1) f32
        w23.T.astype(cd), col(b23),                         # (3, H/2)  bf16, (3,1)   f32
    )
    return feat_params, kernel_weights


def _pick_n_tile(n_pad, bs, h, h2):
    """Largest lane-aligned divisor of n_pad whose live-activation footprint
    fits the VMEM budget; keeps >=2 grid steps when bs==1 so both v7x TCs work."""
    per_lane_bytes = 6 * (3 * h + 2 * h2 + 8)        # f32 tiles + bf16 copies, generous
    cap = max(_LANE, min(8192, (_ACT_VMEM_BUDGET // per_lane_bytes) // _LANE * _LANE))
    if bs == 1 and n_pad >= 2 * _LANE:
        cap = min(cap, (n_pad // 2) // _LANE * _LANE)
    best = _LANE
    d = _LANE
    limit = min(cap, n_pad)
    while d <= limit:
        if n_pad % d == 0:
            best = d
        d += _LANE
    return best


def fold_forward(x, seed, params, *, compute_dtype=jnp.bfloat16):
    """x: (B, C_in, 1) codeword (PyTorch convention), seed: (2, N).
    Returns (B, 3, N) float32 — same as the PyTorch module's forward."""
    bs, cin, _ = x.shape
    n = seed.shape[1]
    n_pad = ((n + _LANE - 1) // _LANE) * _LANE

    feat_params, kw = _prepare_params(params, compute_dtype)
    w11_feat, b11, w21_feat, b_fused = feat_params
    h = w11_feat.shape[1]                    # hidden_dim
    h2 = kw[1].shape[0]                      # hidden_dim // 2

    # Hoisted per-batch feature terms (grid-point invariant): one tiny
    # (B,Cin)@(Cin,H) matvec per folding instead of an (H,Cin) reduce per tile.
    x_flat = x.reshape(bs, cin).astype(jnp.float32)
    feat1 = (x_flat @ w11_feat + b11).reshape(bs, h, 1)
    feat2 = (x_flat @ w21_feat + b_fused).reshape(bs, h, 1)

    # Lane-align the grid axis so every load/store is unmasked and lane-dense.
    seed_pad = seed if n_pad == n else jnp.pad(seed, ((0, 0), (0, n_pad - n)))

    tn = _pick_n_tile(n_pad, bs, h, h2)
    grid = (bs, n_pad // tn)

    # Resident weight/bias blocks: constant index_map, never re-fetched, single buffer.
    def resident(a):
        return pl.BlockSpec(a.shape, lambda b, j: (0, 0),
                            pipeline_mode=pl.Buffered(1))

    in_specs = [
        pl.BlockSpec((2, tn), lambda b, j: (0, j)),          # seed tile (shared by batches)
        pl.BlockSpec((1, h, 1), lambda b, j: (b, 0, 0)),     # feat1 of batch b
        pl.BlockSpec((1, h, 1), lambda b, j: (b, 0, 0)),     # feat2 of batch b
    ] + [resident(a) for a in kw]
    out_specs = pl.BlockSpec((1, 3, tn), lambda b, j: (b, 0, j))

    weight_bytes = sum(a.size * a.dtype.itemsize for a in kw)
    act_bytes = tn * 6 * (3 * h + 2 * h2 + 8)                     # live f32 + bf16 tiles
    io_bytes = 2 * (2 * tn * 4 + 3 * tn * 4 + 2 * h * 4)          # double-buffered seed/out/feat
    vmem_limit = int(min(48 << 20,
                         max(32 << 20, 2 * (weight_bytes + act_bytes + io_bytes))))

    flops = 2 * bs * n_pad * (3 * h * h2 + 2 * h + 3 * h2 + 3)
    bytes_accessed = int(seed_pad.size * 4 + feat1.size * 4 + feat2.size * 4
                         + weight_bytes + bs * 3 * n_pad * 4)

    out_pad = pl.pallas_call(
        _fold_kernel,
        out_shape=jax.ShapeDtypeStruct((bs, 3, n_pad), jnp.float32),
        grid=grid,
        in_specs=in_specs,
        out_specs=out_specs,
        compiler_params=pltpu.CompilerParams(
            dimension_semantics=("parallel", "parallel"),
            vmem_limit_bytes=vmem_limit),
        cost_estimate=pl.CostEstimate(
            flops=flops, transcendentals=0, bytes_accessed=bytes_accessed),
    )(seed_pad, feat1, feat2, *kw)

    return out_pad[:, :, :n] if n_pad != n else out_pad


def make_params(key, in_channel, hidden_dim):
    """Deterministic synthetic parameters; BN (eval mode) given as scale/shift."""
    eps = 1e-5
    keys = iter(jax.random.split(key, 64))

    def conv(cin, cout):
        w = jax.random.normal(next(keys), (cin, cout), jnp.float32) * 0.1
        b = jax.random.normal(next(keys), (1, cout), jnp.float32) * 0.05
        return w, b

    def bn(c):
        gamma = jax.random.uniform(next(keys), (1, c), jnp.float32, 0.5, 1.5)
        beta = jax.random.normal(next(keys), (1, c), jnp.float32) * 0.1
        mean = jax.random.normal(next(keys), (1, c), jnp.float32) * 0.1
        var = jax.random.uniform(next(keys), (1, c), jnp.float32, 0.5, 1.5)
        scale = gamma / jnp.sqrt(var + eps)
        shift = beta - mean * scale
        return scale, shift

    h, h2 = hidden_dim, hidden_dim // 2

    def folding(cin0):
        w1, b1 = conv(cin0, h)
        s1, t1 = bn(h)
        w2, b2 = conv(h, h2)
        s2, t2 = bn(h2)
        w3, b3 = conv(h2, 3)
        return (w1, b1, s1, t1, w2, b2, s2, t2, w3, b3)

    return folding(in_channel + 2) + folding(in_channel + 3)


def make_folding_seed(step):
    lin = jnp.linspace(-1.0, 1.0, step, dtype=jnp.float32)
    a = jnp.tile(lin, step)      # .view(1,step).expand(step,step).reshape(1,-1)
    b = jnp.repeat(lin, step)    # .view(step,1).expand(step,step).reshape(1,-1)
    return jnp.stack([a, b], axis=0)   # (2, step*step)


def fold_reference(x, seed, params):
    """Pure-JAX, unfused f32 reference of the same eval-mode forward."""
    bs, cin, _ = x.shape
    n = seed.shape[1]
    feats = jnp.broadcast_to(x.reshape(bs, cin, 1), (bs, cin, n))       # (B,Cin,N)
    (w11, b11, s11, t11, w12, b12, s12, t12, w13, b13,
     w21, b21, s21, t21, w22, b22, s22, t22, w23, b23) = params

    def mlp(inp_ncl, w1, b1, s1, t1, w2, b2, s2, t2, w3, b3):
        h = jnp.einsum('bcn,cd->bdn', inp_ncl, w1) + b1.T[None]
        h = jnp.maximum(h * s1.T[None] + t1.T[None], 0.0)
        h = jnp.einsum('bcn,cd->bdn', h, w2) + b2.T[None]
        h = jnp.maximum(h * s2.T[None] + t2.T[None], 0.0)
        return jnp.einsum('bcn,cd->bdn', h, w3) + b3.T[None]

    seed_b = jnp.broadcast_to(seed[None], (bs, 2, n))
    fd1 = mlp(jnp.concatenate([seed_b, feats], axis=1),
              w11, b11, s11, t11, w12, b12, s12, t12, w13, b13)
    fd2 = mlp(jnp.concatenate([fd1, feats], axis=1),
              w21, b21, s21, t21, w22, b22, s22, t22, w23, b23)
    return fd2


if __name__ == "__main__":
    bs = 2
    in_channel = 16
    hidden_dim = 32
    step = 4                       # num_sample = 16

    key = jax.random.PRNGKey(0)
    kx, kp = jax.random.split(key)

    x = jax.random.normal(kx, (bs, in_channel, 1), jnp.float32)
    seed = make_folding_seed(step)
    params = make_params(kp, in_channel, hidden_dim)

    out = jax.block_until_ready(fold_forward(x, seed, params))
    assert out.shape == (bs, 3, step * step), out.shape

    ref = jax.block_until_ready(fold_reference(x, seed, params))
    max_err = float(jnp.max(jnp.abs(out - ref)))
    # bf16 MXU operands (f32 accumulation) -> loosened tolerance vs pure-f32 ref.
    assert jnp.allclose(out, ref, atol=5e-2, rtol=5e-2), f"mismatch vs reference: {max_err}"

    print("KERNEL_OK")
</pallas_src>

<mosaic_0001>
module attributes {stable_mosaic.version = 11 : i64} {
  func.func @_fold_kernel(%arg0: i32, %arg1: i32, %arg2: memref<2x128xf32, #tpu.memory_space<vmem>>, %arg3: memref<1x32x1xf32, #tpu.memory_space<vmem>>, %arg4: memref<1x32x1xf32, #tpu.memory_space<vmem>>, %arg5: memref<32x2xf32, #tpu.memory_space<vmem>>, %arg6: memref<16x32xbf16, #tpu.memory_space<vmem>>, %arg7: memref<16x1xf32, #tpu.memory_space<vmem>>, %arg8: memref<32x16xbf16, #tpu.memory_space<vmem>>, %arg9: memref<16x32xbf16, #tpu.memory_space<vmem>>, %arg10: memref<16x1xf32, #tpu.memory_space<vmem>>, %arg11: memref<3x16xbf16, #tpu.memory_space<vmem>>, %arg12: memref<3x1xf32, #tpu.memory_space<vmem>>, %arg13: memref<1x3x128xf32, #tpu.memory_space<vmem>>) attributes {dimension_semantics = [#tpu.dimension_semantics<parallel>, #tpu.dimension_semantics<parallel>], iteration_bounds = array<i64: 2, 1>, scalar_prefetch = 0 : i64, scratch_operands = 0 : i64, tpu.core_type = #tpu.core_type<tc>, window_params = [{transform_indices = @transform_0, window_bounds = array<i64: 2, 128>}, {transform_indices = @transform_1, window_bounds = array<i64: 1, 32, 1>}, {transform_indices = @transform_2, window_bounds = array<i64: 1, 32, 1>}, {pipeline_mode = #tpu.pipeline_mode<synchronous>, transform_indices = @transform_3, window_bounds = array<i64: 32, 2>}, {pipeline_mode = #tpu.pipeline_mode<synchronous>, transform_indices = @transform_4, window_bounds = array<i64: 16, 32>}, {pipeline_mode = #tpu.pipeline_mode<synchronous>, transform_indices = @transform_5, window_bounds = array<i64: 16, 1>}, {pipeline_mode = #tpu.pipeline_mode<synchronous>, transform_indices = @transform_6, window_bounds = array<i64: 32, 16>}, {pipeline_mode = #tpu.pipeline_mode<synchronous>, transform_indices = @transform_7, window_bounds = array<i64: 16, 32>}, {pipeline_mode = #tpu.pipeline_mode<synchronous>, transform_indices = @transform_8, window_bounds = array<i64: 16, 1>}, {pipeline_mode = #tpu.pipeline_mode<synchronous>, transform_indices = @transform_9, window_bounds = array<i64: 3, 16>}, {pipeline_mode = #tpu.pipeline_mode<synchronous>, transform_indices = @transform_10, window_bounds = array<i64: 3, 1>}, {transform_indices = @transform_11, window_bounds = array<i64: 1, 3, 128>}]} {
    %c0 = arith.constant 0 : index
    %c0_0 = arith.constant 0 : index
    %0 = vector.load %arg2[%c0, %c0_0] : memref<2x128xf32, #tpu.memory_space<vmem>>, vector<2x128xf32>
    %c0_1 = arith.constant 0 : index
    %c0_2 = arith.constant 0 : index
    %c0_3 = arith.constant 0 : index
    %1 = vector.load %arg3[%c0_1, %c0_2, %c0_3] : memref<1x32x1xf32, #tpu.memory_space<vmem>>, vector<1x32x1xf32>
    %2 = vector.shape_cast %1 : vector<1x32x1xf32> to vector<32x1xf32>
    %c0_4 = arith.constant 0 : index
    %c0_5 = arith.constant 0 : index
    %c0_6 = arith.constant 0 : index
    %3 = vector.load %arg4[%c0_4, %c0_5, %c0_6] : memref<1x32x1xf32, #tpu.memory_space<vmem>>, vector<1x32x1xf32>
    %4 = vector.shape_cast %3 : vector<1x32x1xf32> to vector<32x1xf32>
    %c0_7 = arith.constant 0 : index
    %c0_8 = arith.constant 0 : index
    %5 = vector.load %arg5[%c0_7, %c0_8] : memref<32x2xf32, #tpu.memory_space<vmem>>, vector<32x2xf32>
    %6 = vector.extract_strided_slice %5 {offsets = [0, 0], sizes = [32, 1], strides = [1, 1]} : vector<32x2xf32> to vector<32x1xf32>
    %7 = vector.extract_strided_slice %0 {offsets = [0, 0], sizes = [1, 128], strides = [1, 1]} : vector<2x128xf32> to vector<1x128xf32>
    %8 = vector.broadcast %6 : vector<32x1xf32> to vector<32x128xf32>
    %9 = vector.broadcast %7 : vector<1x128xf32> to vector<32x128xf32>
    %10 = arith.mulf %8, %9 : vector<32x128xf32>
    %11 = vector.extract_strided_slice %5 {offsets = [0, 1], sizes = [32, 1], strides = [1, 1]} : vector<32x2xf32> to vector<32x1xf32>
    %12 = vector.extract_strided_slice %0 {offsets = [1, 0], sizes = [1, 128], strides = [1, 1]} : vector<2x128xf32> to vector<1x128xf32>
    %13 = vector.broadcast %11 : vector<32x1xf32> to vector<32x128xf32>
    %14 = vector.broadcast %12 : vector<1x128xf32> to vector<32x128xf32>
    %15 = arith.mulf %13, %14 : vector<32x128xf32>
    %16 = arith.addf %10, %15 : vector<32x128xf32>
    %17 = vector.broadcast %2 : vector<32x1xf32> to vector<32x128xf32>
    %18 = arith.addf %16, %17 : vector<32x128xf32>
    %cst = arith.constant 0.000000e+00 : f32
    %19 = vector.broadcast %cst : f32 to vector<32x128xf32>
    %20 = arith.maximumf %18, %19 : vector<32x128xf32>
    %c0_9 = arith.constant 0 : index
    %c0_10 = arith.constant 0 : index
    %21 = vector.load %arg6[%c0_9, %c0_10] : memref<16x32xbf16, #tpu.memory_space<vmem>>, vector<16x32xbf16>
    %22 = arith.truncf %20 : vector<32x128xf32> to vector<32x128xbf16>
    %cst_11 = arith.constant dense<0.000000e+00> : vector<16x128xf32>
    %23 = tpu.matmul %21, %22, %cst_11 {dimension_numbers = #tpu.dot_dimension_numbers<[1], [0], [0], [1], [0, 0, 1, 1], [], []>} : vector<16x32xbf16>, vector<32x128xbf16>, vector<16x128xf32> -> vector<16x128xf32>
    %c0_12 = arith.constant 0 : index
    %c0_13 = arith.constant 0 : index
    %24 = vector.load %arg7[%c0_12, %c0_13] : memref<16x1xf32, #tpu.memory_space<vmem>>, vector<16x1xf32>
    %25 = vector.broadcast %24 : vector<16x1xf32> to vector<16x128xf32>
    %26 = arith.addf %23, %25 : vector<16x128xf32>
    %cst_14 = arith.constant 0.000000e+00 : f32
    %27 = vector.broadcast %cst_14 : f32 to vector<16x128xf32>
    %28 = arith.maximumf %26, %27 : vector<16x128xf32>
    %c0_15 = arith.constant 0 : index
    %c0_16 = arith.constant 0 : index
    %29 = vector.load %arg8[%c0_15, %c0_16] : memref<32x16xbf16, #tpu.memory_space<vmem>>, vector<32x16xbf16>
    %30 = arith.truncf %28 : vector<16x128xf32> to vector<16x128xbf16>
    %cst_17 = arith.constant dense<0.000000e+00> : vector<32x128xf32>
    %31 = tpu.matmul %29, %30, %cst_17 {dimension_numbers = #tpu.dot_dimension_numbers<[1], [0], [0], [1], [0, 0, 1, 1], [], []>} : vector<32x16xbf16>, vector<16x128xbf16>, vector<32x128xf32> -> vector<32x128xf32>
    %32 = vector.broadcast %4 : vector<32x1xf32> to vector<32x128xf32>
    %33 = arith.addf %31, %32 : vector<32x128xf32>
    %cst_18 = arith.constant 0.000000e+00 : f32
    %34 = vector.broadcast %cst_18 : f32 to vector<32x128xf32>
    %35 = arith.maximumf %33, %34 : vector<32x128xf32>
    %c0_19 = arith.constant 0 : index
    %c0_20 = arith.constant 0 : index
    %36 = vector.load %arg9[%c0_19, %c0_20] : memref<16x32xbf16, #tpu.memory_space<vmem>>, vector<16x32xbf16>
    %37 = arith.truncf %35 : vector<32x128xf32> to vector<32x128xbf16>
    %cst_21 = arith.constant dense<0.000000e+00> : vector<16x128xf32>
    %38 = tpu.matmul %36, %37, %cst_21 {dimension_numbers = #tpu.dot_dimension_numbers<[1], [0], [0], [1], [0, 0, 1, 1], [], []>} : vector<16x32xbf16>, vector<32x128xbf16>, vector<16x128xf32> -> vector<16x128xf32>
    %c0_22 = arith.constant 0 : index
    %c0_23 = arith.constant 0 : index
    %39 = vector.load %arg10[%c0_22, %c0_23] : memref<16x1xf32, #tpu.memory_space<vmem>>, vector<16x1xf32>
    %40 = vector.broadcast %39 : vector<16x1xf32> to vector<16x128xf32>
    %41 = arith.addf %38, %40 : vector<16x128xf32>
    %cst_24 = arith.constant 0.000000e+00 : f32
    %42 = vector.broadcast %cst_24 : f32 to vector<16x128xf32>
    %43 = arith.maximumf %41, %42 : vector<16x128xf32>
    %c0_25 = arith.constant 0 : index
    %c0_26 = arith.constant 0 : index
    %44 = vector.load %arg11[%c0_25, %c0_26] : memref<3x16xbf16, #tpu.memory_space<vmem>>, vector<3x16xbf16>
    %45 = arith.truncf %43 : vector<16x128xf32> to vector<16x128xbf16>
    %cst_27 = arith.constant dense<0.000000e+00> : vector<3x128xf32>
    %46 = tpu.matmul %44, %45, %cst_27 {dimension_numbers = #tpu.dot_dimension_numbers<[1], [0], [0], [1], [0, 0, 1, 1], [], []>} : vector<3x16xbf16>, vector<16x128xbf16>, vector<3x128xf32> -> vector<3x128xf32>
    %c0_28 = arith.constant 0 : index
    %c0_29 = arith.constant 0 : index
    %47 = vector.load %arg12[%c0_28, %c0_29] : memref<3x1xf32, #tpu.memory_space<vmem>>, vector<3x1xf32>
    %48 = vector.broadcast %47 : vector<3x1xf32> to vector<3x128xf32>
    %49 = arith.addf %46, %48 : vector<3x128xf32>
    %50 = vector.shape_cast %49 : vector<3x128xf32> to vector<1x3x128xf32>
    %c0_30 = arith.constant 0 : index
    %c0_31 = arith.constant 0 : index
    %c0_32 = arith.constant 0 : index
    %51 = vector.load %arg13[%c0_30, %c0_31, %c0_32] : memref<1x3x128xf32, #tpu.memory_space<vmem>>, vector<1x3x128xf32>
    tpu.vector_store %arg13[%c0_30, %c0_31, %c0_32], %50 {strides = array<i32>} : memref<1x3x128xf32, #tpu.memory_space<vmem>>, vector<1x3x128xf32>,
    return
  }
  func.func @transform_0(%arg0: i32, %arg1: i32) -> (i32, i32) {
    %c0_i32 = arith.constant 0 : i32
    %c0_i32_0 = arith.constant 0 : i32
    return %c0_i32, %arg1 : i32, i32
  }
  func.func @transform_1(%arg0: i32, %arg1: i32) -> (i32, i32, i32) {
    %c0_i32 = arith.constant 0 : i32
    %c0_i32_0 = arith.constant 0 : i32
    %c0_i32_1 = arith.constant 0 : i32
    return %arg0, %c0_i32, %c0_i32_0 : i32, i32, i32
  }
  func.func @transform_2(%arg0: i32, %arg1: i32) -> (i32, i32, i32) {
    %c0_i32 = arith.constant 0 : i32
    %c0_i32_0 = arith.constant 0 : i32
    %c0_i32_1 = arith.constant 0 : i32
    return %arg0, %c0_i32, %c0_i32_0 : i32, i32, i32
  }
  func.func @transform_3(%arg0: i32, %arg1: i32) -> (i32, i32) {
    %c0_i32 = arith.constant 0 : i32
    %c0_i32_0 = arith.constant 0 : i32
    %c0_i32_1 = arith.constant 0 : i32
    return %c0_i32, %c0_i32_0 : i32, i32
  }
  func.func @transform_4(%arg0: i32, %arg1: i32) -> (i32, i32) {
    %c0_i32 = arith.constant 0 : i32
    %c0_i32_0 = arith.constant 0 : i32
    %c0_i32_1 = arith.constant 0 : i32
    return %c0_i32, %c0_i32_0 : i32, i32
  }
  func.func @transform_5(%arg0: i32, %arg1: i32) -> (i32, i32) {
    %c0_i32 = arith.constant 0 : i32
    %c0_i32_0 = arith.constant 0 : i32
    %c0_i32_1 = arith.constant 0 : i32
    return %c0_i32, %c0_i32_0 : i32, i32
  }
  func.func @transform_6(%arg0: i32, %arg1: i32) -> (i32, i32) {
    %c0_i32 = arith.constant 0 : i32
    %c0_i32_0 = arith.constant 0 : i32
    %c0_i32_1 = arith.constant 0 : i32
    return %c0_i32, %c0_i32_0 : i32, i32
  }
  func.func @transform_7(%arg0: i32, %arg1: i32) -> (i32, i32) {
    %c0_i32 = arith.constant 0 : i32
    %c0_i32_0 = arith.constant 0 : i32
    %c0_i32_1 = arith.constant 0 : i32
    return %c0_i32, %c0_i32_0 : i32, i32
  }
  func.func @transform_8(%arg0: i32, %arg1: i32) -> (i32, i32) {
    %c0_i32 = arith.constant 0 : i32
    %c0_i32_0 = arith.constant 0 : i32
    %c0_i32_1 = arith.constant 0 : i32
    return %c0_i32, %c0_i32_0 : i32, i32
  }
  func.func @transform_9(%arg0: i32, %arg1: i32) -> (i32, i32) {
    %c0_i32 = arith.constant 0 : i32
    %c0_i32_0 = arith.constant 0 : i32
    %c0_i32_1 = arith.constant 0 : i32
    return %c0_i32, %c0_i32_0 : i32, i32
  }
  func.func @transform_10(%arg0: i32, %arg1: i32) -> (i32, i32) {
    %c0_i32 = arith.constant 0 : i32
    %c0_i32_0 = arith.constant 0 : i32
    %c0_i32_1 = arith.constant 0 : i32
    return %c0_i32, %c0_i32_0 : i32, i32
  }
  func.func @transform_11(%arg0: i32, %arg1: i32) -> (i32, i32, i32) {
    %c0_i32 = arith.constant 0 : i32
    %c0_i32_0 = arith.constant 0 : i32
    return %arg0, %c0_i32, %arg1 : i32, i32, i32
  }
}

</mosaic_0001>

<llo_original>
// kernel: tpu_custom_call.1
$region0: #{tpu_custom_call.1}
  #allocation0 [shape = 'u32[]', space=smem, size = 0x4, offset = 0x4, fixed_abs, tag = 'smem constant byte address 0x4 - core index']
  #allocation1 [shape = 'u32[144,128]{1,0:T(1,128)}', space=vmem, size = 0x12000, scoped, tag = 'internal scratch']
  %s0 = inlined_call_operand.vmem [shape: f32[2,128], index: 0, kind: input, shape index: {}]
  %s1 = inlined_call_operand.vmem [shape: f32[2,32,1], index: 1, kind: input, shape index: {}]
  %s2 = inlined_call_operand.vmem [shape: f32[2,32,1], index: 2, kind: input, shape index: {}]
  %s3 = inlined_call_operand.vmem [shape: f32[32,2], index: 3, kind: input, shape index: {}]
  %s4 = inlined_call_operand.vmem [shape: bf16[16,32], index: 4, kind: input, shape index: {}]
  %s5 = inlined_call_operand.vmem [shape: f32[16,1], index: 5, kind: input, shape index: {}]
  %s6 = inlined_call_operand.vmem [shape: bf16[32,16], index: 6, kind: input, shape index: {}]
  %s7 = inlined_call_operand.vmem [shape: bf16[16,32], index: 7, kind: input, shape index: {}]
  %s8 = inlined_call_operand.vmem [shape: f32[16,1], index: 8, kind: input, shape index: {}]
  %s9 = inlined_call_operand.vmem [shape: bf16[3,16], index: 9, kind: input, shape index: {}]
  %s10 = inlined_call_operand.vmem [shape: f32[3,1], index: 10, kind: input, shape index: {}]
  %s11 = inlined_call_operand.vmem [shape: f32[2,3,128], index: 11, kind: output, shape index: {}]
  %s12 = sld [smem:[#allocation0]]
  $region77: #{tpu_custom_call.1} parent=0
    _
  %s14 = ssub.s32 1, %s12
  %s15 = scalar_select 0, %s14, %s12
  loop: start=0, step=1, limit=4
  $region2: #{tpu_custom_call.1} parent=0 // loop_pre_header
    _
  $region3: #{tpu_custom_call.1} parent=0 // loop_header
    %s17 = sphi 0, %s21
    %p18 = scmp.ge.s32.totalorder %s17, 4
    %s24 = sphi 0, %s36
    %s25 = sphi 0, %s32
    %s26 = sphi 0, %s24
    %s27 = sphi 0, %s25
    %s28 = sphi 0, %s26
    %s29 = sphi 0, %s27
    %s39 = sphi 0, %s41
    %s42 = sphi 0, %s39
    %s43 = sphi 0, %s42
    %s59 = sphi 0, %s43
    %s65 = sphi 0, %s67
    %s68 = sphi 0, %s65
    %s69 = sphi 0, %s68
    %s85 = sphi 0, %s69
    %s91 = sphi 0, %s93
    %s94 = sphi 0, %s91
    %s95 = sphi 0, %s94
    %s111 = sphi 0, %s95
    %s115 = sphi 0, %s115
    %s117 = sphi 0, %s115
    %s118 = sphi 0, %s117
    %s132 = sphi 0, %s118
    %s136 = sphi 0, %s136
    %s138 = sphi 0, %s136
    %s139 = sphi 0, %s138
    %s153 = sphi 0, %s139
    %s157 = sphi 0, %s157
    %s159 = sphi 0, %s157
    %s160 = sphi 0, %s159
    %s174 = sphi 0, %s160
    %s178 = sphi 0, %s178
    %s180 = sphi 0, %s178
    %s181 = sphi 0, %s180
    %s195 = sphi 0, %s181
    %s199 = sphi 0, %s199
    %s201 = sphi 0, %s199
    %s202 = sphi 0, %s201
    %s216 = sphi 0, %s202
    %s220 = sphi 0, %s220
    %s222 = sphi 0, %s220
    %s223 = sphi 0, %s222
    %s237 = sphi 0, %s223
    %s241 = sphi 0, %s241
    %s243 = sphi 0, %s241
    %s244 = sphi 0, %s243
    %s258 = sphi 0, %s244
    %s262 = sphi 0, %s262
    %s264 = sphi 0, %s262
    %s265 = sphi 0, %s264
    %s279 = sphi 0, %s265
    %s287 = sphi 0, %s289
    %s290 = sphi 0, %s287
    %s291 = sphi 0, %s290
    %s307 = sphi 0, %s291
  $region4: #{tpu_custom_call.1} parent=0 // loop_header_branch
    %20 = sbr.rel (%p18) target = $region8
  $region5: #{tpu_custom_call.1} parent=0 // loop_body
    %s22 = ssub.s32 %s17, 1
    %s23 = ssub.s32 %s17, 2
    %s30 = sadd.s32 1, %s25
    %p31 = scmp.ge.s32.totalorder %s30, 1
    %s32 = scalar_select %p31, 0, %s30
    %s33 = sadd.s32 1, %s24
    %s34 = scalar_select %p31, %s33, %s24
    %p35 = scmp.ge.s32.totalorder %s34, 2
    %s36 = scalar_select %p35, 0, %s34
    %s37 = ssub.s32 %s25, %s32
    %p38 = scmp.eq.s32.totalorder %s37, 0
    %s40 = sadd.s32 %s39, 1
    %s41 = scalar_select %p38, %s39, %s40
    %p44 = pneg %p38
    %p45 = scmp.eq.s32.totalorder %s17, 1
    %p46 = por %p44, %p45
    %p47 = scmp.ne.s32.totalorder %s39, %s42
    %p48 = scmp.eq.s32.totalorder %s17, 0
    %p49 = por %p47, %p48
    %p50 = scmp.ne.s32.totalorder %s39, %s42
    %p51 = scmp.eq.s32.totalorder %s22, 1
    %p52 = por %p50, %p51
    %p53 = scmp.ne.s32.totalorder %s42, %s43
    %p54 = scmp.eq.s32.totalorder %s22, 0
    %p55 = por %p53, %p54
    %p56 = scmp.ne.s32.totalorder %s42, %s43
    %p57 = scmp.eq.s32.totalorder %s23, 1
    %p58 = por %p56, %p57
    %p60 = scmp.ne.s32.totalorder %s43, %s59
    %p61 = scmp.eq.s32.totalorder %s23, 0
    %p62 = por %p60, %p61
    %s63 = ssub.s32 %s24, %s36
    %p64 = scmp.eq.s32.totalorder %s63, 0
    %s66 = sadd.s32 %s65, 1
    %s67 = scalar_select %p64, %s65, %s66
    %p70 = pneg %p64
    %p71 = scmp.eq.s32.totalorder %s17, 1
    %p72 = por %p70, %p71
    %p73 = scmp.ne.s32.totalorder %s65, %s68
    %p74 = scmp.eq.s32.totalorder %s17, 0
    %p75 = por %p73, %p74
    %p76 = scmp.ne.s32.totalorder %s65, %s68
    %p77 = scmp.eq.s32.totalorder %s22, 1
    %p78 = por %p76, %p77
    %p79 = scmp.ne.s32.totalorder %s68, %s69
    %p80 = scmp.eq.s32.totalorder %s22, 0
    %p81 = por %p79, %p80
    %p82 = scmp.ne.s32.totalorder %s68, %s69
    %p83 = scmp.eq.s32.totalorder %s23, 1
    %p84 = por %p82, %p83
    %p86 = scmp.ne.s32.totalorder %s69, %s85
    %p87 = scmp.eq.s32.totalorder %s23, 0
    %p88 = por %p86, %p87
    %s89 = ssub.s32 %s24, %s36
    %p90 = scmp.eq.s32.totalorder %s89, 0
    %s92 = sadd.s32 %s91, 1
    %s93 = scalar_select %p90, %s91, %s92
    %p96 = pneg %p90
    %p97 = scmp.eq.s32.totalorder %s17, 1
    %p98 = por %p96, %p97
    %p99 = scmp.ne.s32.totalorder %s91, %s94
    %p100 = scmp.eq.s32.totalorder %s17, 0
    %p101 = por %p99, %p100
    %p102 = scmp.ne.s32.totalorder %s91, %s94
    %p103 = scmp.eq.s32.totalorder %s22, 1
    %p104 = por %p102, %p103
    %p105 = scmp.ne.s32.totalorder %s94, %s95
    %p106 = scmp.eq.s32.totalorder %s22, 0
    %p107 = por %p105, %p106
    %p108 = scmp.ne.s32.totalorder %s94, %s95
    %p109 = scmp.eq.s32.totalorder %s23, 1
    %p110 = por %p108, %p109
    %p112 = scmp.ne.s32.totalorder %s95, %s111
    %p113 = scmp.eq.s32.totalorder %s23, 0
    %p114 = por %p112, %p113
    %s116 = sadd.s32 %s115, 1
    %p119 = scmp.eq.s32.totalorder %s17, 1
    %p120 = scmp.ne.s32.totalorder %s115, %s117
    %p121 = scmp.eq.s32.totalorder %s17, 0
    %p122 = por %p120, %p121
    %p123 = scmp.ne.s32.totalorder %s115, %s117
    %p124 = scmp.eq.s32.totalorder %s22, 1
    %p125 = por %p123, %p124
    %p126 = scmp.ne.s32.totalorder %s117, %s118
    %p127 = scmp.eq.s32.totalorder %s22, 0
    %p128 = por %p126, %p127
    %p129 = scmp.ne.s32.totalorder %s117, %s118
    %p130 = scmp.eq.s32.totalorder %s23, 1
    %p131 = por %p129, %p130
    %p133 = scmp.ne.s32.totalorder %s118, %s132
    %p134 = scmp.eq.s32.totalorder %s23, 0
    %p135 = por %p133, %p134
    %s137 = sadd.s32 %s136, 1
    %p140 = scmp.eq.s32.totalorder %s17, 1
    %p141 = scmp.ne.s32.totalorder %s136, %s138
    %p142 = scmp.eq.s32.totalorder %s17, 0
    %p143 = por %p141, %p142
    %p144 = scmp.ne.s32.totalorder %s136, %s138
    %p145 = scmp.eq.s32.totalorder %s22, 1
    %p146 = por %p144, %p145
    %p147 = scmp.ne.s32.totalorder %s138, %s139
    %p148 = scmp.eq.s32.totalorder %s22, 0
    %p149 = por %p147, %p148
    %p150 = scmp.ne.s32.totalorder %s138, %s139
    %p151 = scmp.eq.s32.totalorder %s23, 1
    %p152 = por %p150, %p151
    %p154 = scmp.ne.s32.totalorder %s139, %s153
    %p155 = scmp.eq.s32.totalorder %s23, 0
    %p156 = por %p154, %p155
    %s158 = sadd.s32 %s157, 1
    %p161 = scmp.eq.s32.totalorder %s17, 1
    %p162 = scmp.ne.s32.totalorder %s157, %s159
    %p163 = scmp.eq.s32.totalorder %s17, 0
    %p164 = por %p162, %p163
    %p165 = scmp.ne.s32.totalorder %s157, %s159
    %p166 = scmp.eq.s32.totalorder %s22, 1
    %p167 = por %p165, %p166
    %p168 = scmp.ne.s32.totalorder %s159, %s160
    %p169 = scmp.eq.s32.totalorder %s22, 0
    %p170 = por %p168, %p169
    %p171 = scmp.ne.s32.totalorder %s159, %s160
    %p172 = scmp.eq.s32.totalorder %s23, 1
    %p173 = por %p171, %p172
    %p175 = scmp.ne.s32.totalorder %s160, %s174
    %p176 = scmp.eq.s32.totalorder %s23, 0
    %p177 = por %p175, %p176
    %s179 = sadd.s32 %s178, 1
    %p182 = scmp.eq.s32.totalorder %s17, 1
    %p183 = scmp.ne.s32.totalorder %s178, %s180
    %p184 = scmp.eq.s32.totalorder %s17, 0
    %p185 = por %p183, %p184
    %p186 = scmp.ne.s32.totalorder %s178, %s180
    %p187 = scmp.eq.s32.totalorder %s22, 1
    %p188 = por %p186, %p187
    %p189 = scmp.ne.s32.totalorder %s180, %s181
    %p190 = scmp.eq.s32.totalorder %s22, 0
    %p191 = por %p189, %p190
    %p192 = scmp.ne.s32.totalorder %s180, %s181
    %p193 = scmp.eq.s32.totalorder %s23, 1
    %p194 = por %p192, %p193
    %p196 = scmp.ne.s32.totalorder %s181, %s195
    %p197 = scmp.eq.s32.totalorder %s23, 0
    %p198 = por %p196, %p197
    %s200 = sadd.s32 %s199, 1
    %p203 = scmp.eq.s32.totalorder %s17, 1
    %p204 = scmp.ne.s32.totalorder %s199, %s201
    %p205 = scmp.eq.s32.totalorder %s17, 0
    %p206 = por %p204, %p205
    %p207 = scmp.ne.s32.totalorder %s199, %s201
    %p208 = scmp.eq.s32.totalorder %s22, 1
    %p209 = por %p207, %p208
    %p210 = scmp.ne.s32.totalorder %s201, %s202
    %p211 = scmp.eq.s32.totalorder %s22, 0
    %p212 = por %p210, %p211
    %p213 = scmp.ne.s32.totalorder %s201, %s202
    %p214 = scmp.eq.s32.totalorder %s23, 1
    %p215 = por %p213, %p214
    %p217 = scmp.ne.s32.totalorder %s202, %s216
    %p218 = scmp.eq.s32.totalorder %s23, 0
    %p219 = por %p217, %p218
    %s221 = sadd.s32 %s220, 1
    %p224 = scmp.eq.s32.totalorder %s17, 1
    %p225 = scmp.ne.s32.totalorder %s220, %s222
    %p226 = scmp.eq.s32.totalorder %s17, 0
    %p227 = por %p225, %p226
    %p228 = scmp.ne.s32.totalorder %s220, %s222
    %p229 = scmp.eq.s32.totalorder %s22, 1
    %p230 = por %p228, %p229
    %p231 = scmp.ne.s32.totalorder %s222, %s223
    %p232 = scmp.eq.s32.totalorder %s22, 0
    %p233 = por %p231, %p232
    %p234 = scmp.ne.s32.totalorder %s222, %s223
    %p235 = scmp.eq.s32.totalorder %s23, 1
    %p236 = por %p234, %p235
    %p238 = scmp.ne.s32.totalorder %s223, %s237
    %p239 = scmp.eq.s32.totalorder %s23, 0
    %p240 = por %p238, %p239
    %s242 = sadd.s32 %s241, 1
    %p245 = scmp.eq.s32.totalorder %s17, 1
    %p246 = scmp.ne.s32.totalorder %s241, %s243
    %p247 = scmp.eq.s32.totalorder %s17, 0
    %p248 = por %p246, %p247
    %p249 = scmp.ne.s32.totalorder %s241, %s243
    %p250 = scmp.eq.s32.totalorder %s22, 1
    %p251 = por %p249, %p250
    %p252 = scmp.ne.s32.totalorder %s243, %s244
    %p253 = scmp.eq.s32.totalorder %s22, 0
    %p254 = por %p252, %p253
    %p255 = scmp.ne.s32.totalorder %s243, %s244
    %p256 = scmp.eq.s32.totalorder %s23, 1
    %p257 = por %p255, %p256
    %p259 = scmp.ne.s32.totalorder %s244, %s258
    %p260 = scmp.eq.s32.totalorder %s23, 0
    %p261 = por %p259, %p260
    %s263 = sadd.s32 %s262, 1
    %p266 = scmp.eq.s32.totalorder %s17, 1
    %p267 = scmp.ne.s32.totalorder %s262, %s264
    %p268 = scmp.eq.s32.totalorder %s17, 0
    %p269 = por %p267, %p268
    %p270 = scmp.ne.s32.totalorder %s262, %s264
    %p271 = scmp.eq.s32.totalorder %s22, 1
    %p272 = por %p270, %p271
    %p273 = scmp.ne.s32.totalorder %s264, %s265
    %p274 = scmp.eq.s32.totalorder %s22, 0
    %p275 = por %p273, %p274
    %p276 = scmp.ne.s32.totalorder %s264, %s265
    %p277 = scmp.eq.s32.totalorder %s23, 1
    %p278 = por %p276, %p277
    %p280 = scmp.ne.s32.totalorder %s265, %s279
    %p281 = scmp.eq.s32.totalorder %s23, 0
    %p282 = por %p280, %p281
    %s283 = ssub.s32 %s24, %s36
    %s284 = ssub.s32 %s25, %s32
    %s285 = sor.u32 %s283, %s284
    %p286 = scmp.eq.s32.totalorder %s285, 0
    %s288 = sadd.s32 %s287, 1
    %s289 = scalar_select %p286, %s287, %s288
    %p292 = pneg %p286
    %p293 = scmp.eq.s32.totalorder %s17, 1
    %p294 = por %p292, %p293
    %p295 = scmp.ne.s32.totalorder %s287, %s290
    %p296 = scmp.eq.s32.totalorder %s17, 0
    %p297 = por %p295, %p296
    %p298 = scmp.ne.s32.totalorder %s287, %s290
    %p299 = scmp.eq.s32.totalorder %s22, 1
    %p300 = por %p298, %p299
    %p301 = scmp.ne.s32.totalorder %s290, %s291
    %p302 = scmp.eq.s32.totalorder %s22, 0
    %p303 = por %p301, %p302
    %p304 = scmp.ne.s32.totalorder %s290, %s291
    %p305 = scmp.eq.s32.totalorder %s23, 1
    %p306 = por %p304, %p305
    %p308 = scmp.ne.s32.totalorder %s291, %s307
    %p309 = scmp.eq.s32.totalorder %s23, 0
    %p310 = por %p308, %p309
    %p311 = scmp.le.s32.totalorder 1, %s17
    %p312 = scmp.lt.s32.totalorder %s17, 3
    %p313 = pnand %p311, %p312
    %p314 = pneg %p313
    // Predicated region
    $region9: #{tpu_custom_call.1} parent=5 // pred_check
      _
    $region10: #{tpu_custom_call.1} parent=5 // pred_check_branch
      %316 = sbr.rel (%p313) target = $region12
    $region11: #{tpu_custom_call.1} parent=5 // pred_region
      %s317 = ssub.s32 %s17, 1
      // Predicated region
      $region13: #{tpu_custom_call.1} parent=11 // pred_check
        %p318 = pneg %p55
      $region14: #{tpu_custom_call.1} parent=11 // pred_check_branch
        %320 = sbr.rel (%p318) target = $region16
      $region15: #{tpu_custom_call.1} parent=11 // pred_region
        %p321 = scmp.lt.s32.totalorder %s27, 0
        %s322 = scalar_select %p321, %s27, 0
        %s323 = smul.addr %s322, 2
        %s324 = scalar_lea.vmem %s0, %s323
      $region16: #{tpu_custom_call.1} parent=11 // pred_fallthru
        _
      // Predicated region
      $region17: #{tpu_custom_call.1} parent=11 // pred_check
        %p325 = pneg %p128
      $region18: #{tpu_custom_call.1} parent=11 // pred_check_branch
        %327 = sbr.rel (%p325) target = $region20
      $region19: #{tpu_custom_call.1} parent=11 // pred_region
        _
      $region20: #{tpu_custom_call.1} parent=11 // pred_fallthru
        _
      // Predicated region
      $region21: #{tpu_custom_call.1} parent=11 // pred_check
        %p328 = pneg %p149
      $region22: #{tpu_custom_call.1} parent=11 // pred_check_branch
        %330 = sbr.rel (%p328) target = $region24
      $region23: #{tpu_custom_call.1} parent=11 // pred_region
        _
      $region24: #{tpu_custom_call.1} parent=11 // pred_fallthru
        _
      // Predicated region
      $region25: #{tpu_custom_call.1} parent=11 // pred_check
        %p331 = pneg %p170
      $region26: #{tpu_custom_call.1} parent=11 // pred_check_branch
        %333 = sbr.rel (%p331) target = $region28
      $region27: #{tpu_custom_call.1} parent=11 // pred_region
        _
      $region28: #{tpu_custom_call.1} parent=11 // pred_fallthru
        _
      // Predicated region
      $region29: #{tpu_custom_call.1} parent=11 // pred_check
        %p334 = pneg %p191
      $region30: #{tpu_custom_call.1} parent=11 // pred_check_branch
        %336 = sbr.rel (%p334) target = $region32
      $region31: #{tpu_custom_call.1} parent=11 // pred_region
        _
      $region32: #{tpu_custom_call.1} parent=11 // pred_fallthru
        _
      // Predicated region
      $region33: #{tpu_custom_call.1} parent=11 // pred_check
        %p337 = pneg %p212
      $region34: #{tpu_custom_call.1} parent=11 // pred_check_branch
        %339 = sbr.rel (%p337) target = $region36
      $region35: #{tpu_custom_call.1} parent=11 // pred_region
        _
      $region36: #{tpu_custom_call.1} parent=11 // pred_fallthru
        _
      // Predicated region
      $region37: #{tpu_custom_call.1} parent=11 // pred_check
        %p340 = pneg %p233
      $region38: #{tpu_custom_call.1} parent=11 // pred_check_branch
        %342 = sbr.rel (%p340) target = $region40
      $region39: #{tpu_custom_call.1} parent=11 // pred_region
        _
      $region40: #{tpu_custom_call.1} parent=11 // pred_fallthru
        _
      // Predicated region
      $region41: #{tpu_custom_call.1} parent=11 // pred_check
        %p343 = pneg %p254
      $region42: #{tpu_custom_call.1} parent=11 // pred_check_branch
        %345 = sbr.rel (%p343) target = $region44
      $region43: #{tpu_custom_call.1} parent=11 // pred_region
        _
      $region44: #{tpu_custom_call.1} parent=11 // pred_fallthru
        _
      // Predicated region
      $region45: #{tpu_custom_call.1} parent=11 // pred_check
        %p346 = pneg %p275
      $region46: #{tpu_custom_call.1} parent=11 // pred_check_branch
        %348 = sbr.rel (%p346) target = $region48
      $region47: #{tpu_custom_call.1} parent=11 // pred_region
        _
      $region48: #{tpu_custom_call.1} parent=11 // pred_fallthru
        _
    $region12: #{tpu_custom_call.1} parent=5 // pred_fallthru
      _
    %p349 = scmp.lt.s32.totalorder %s17, 2
    // Predicated region
    $region49: #{tpu_custom_call.1} parent=5 // pred_check
      %p350 = pneg %p349
    $region50: #{tpu_custom_call.1} parent=5 // pred_check_branch
      %352 = sbr.rel (%p350) target = $region52
    $region51: #{tpu_custom_call.1} parent=5 // pred_region
      // Predicated region
      $region53: #{tpu_custom_call.1} parent=51 // pred_check
        %p353 = pneg %p75
      $region54: #{tpu_custom_call.1} parent=51 // pred_check_branch
        %355 = sbr.rel (%p353) target = $region56
      $region55: #{tpu_custom_call.1} parent=51 // pred_region
        %p356 = scmp.lt.s32.totalorder %s24, 1
        %s357 = scalar_select %p356, %s24, 1
        %s358 = smul.addr %s357, 4
        %s359 = smul.addr %s358, 8
        %s360 = scalar_lea.vmem %s1, %s359
      $region56: #{tpu_custom_call.1} parent=51 // pred_fallthru
        _
      // Predicated region
      $region57: #{tpu_custom_call.1} parent=51 // pred_check
        %p361 = pneg %p101
      $region58: #{tpu_custom_call.1} parent=51 // pred_check_branch
        %363 = sbr.rel (%p361) target = $region60
      $region59: #{tpu_custom_call.1} parent=51 // pred_region
        %p364 = scmp.lt.s32.totalorder %s24, 1
        %s365 = scalar_select %p364, %s24, 1
        %s366 = smul.addr %s365, 4
        %s367 = smul.addr %s366, 8
        %s368 = scalar_lea.vmem %s2, %s367
      $region60: #{tpu_custom_call.1} parent=51 // pred_fallthru
        _
    $region52: #{tpu_custom_call.1} parent=5 // pred_fallthru
      _
    %p369 = scmp.le.s32.totalorder 1, %s17
    %p370 = scmp.lt.s32.totalorder %s17, 3
    %p371 = pnand %p369, %p370
    %p372 = pneg %p371
    // Predicated region
    $region61: #{tpu_custom_call.1} parent=5 // pred_check
      _
    $region62: #{tpu_custom_call.1} parent=5 // pred_check_branch
      %374 = sbr.rel (%p371) target = $region64
    $region63: #{tpu_custom_call.1} parent=5 // pred_region
      %s375 = ssub.s32 %s17, 1
      %p376 = scmp.lt.s32.totalorder %s27, 0
      %s377 = scalar_select %p376, %s27, 0
      %s378 = smul.addr %s377, 2
      %s379 = scalar_lea.vmem %s0, %s378
      %p380 = pneg %p55
      %p381 = pneg %p52
      %p382 = scmp.lt.s32.totalorder %s26, 1
      %s383 = scalar_select %p382, %s26, 1
      %s384 = smul.addr %s383, 4
      %s385 = smul.addr %s384, 8
      %s386 = scalar_lea.vmem %s1, %s385
      %p387 = pneg %p81
      %p388 = pneg %p78
      %p389 = scmp.lt.s32.totalorder %s26, 1
      %s390 = scalar_select %p389, %s26, 1
      %s391 = smul.addr %s390, 4
      %s392 = smul.addr %s391, 8
      %s393 = scalar_lea.vmem %s2, %s392
      %p394 = pneg %p107
      %p395 = pneg %p104
      %p396 = pneg %p128
      %p397 = pneg %p125
      %p398 = pneg %p149
      %p399 = pneg %p146
      %p400 = pneg %p170
      %p401 = pneg %p167
      %p402 = pneg %p191
      %p403 = pneg %p188
      %p404 = pneg %p212
      %p405 = pneg %p209
      %p406 = pneg %p233
      %p407 = pneg %p230
      %p408 = pneg %p254
      %p409 = pneg %p251
      %p410 = pneg %p275
      %p411 = pneg %p272
      %p412 = pneg %p303
      %p413 = pneg %p300
      %p414 = scmp.lt.s32.totalorder %s26, 1
      %s415 = scalar_select %p414, %s26, 1
      %p416 = scmp.lt.s32.totalorder %s27, 0
      %s417 = scalar_select %p416, %s27, 0
      %s418 = sadd.s32 %s417, %s415
      %s419 = smul.addr %s418, 4
      %s420 = scalar_lea.vmem %s11, %s419
      %p421 = scmp.lt.s32.totalorder %s27, 0
      %s422 = scalar_select %p421, %s27, 0
      %s423 = smul.addr %s422, 2
      %s424 = scalar_lea.vmem %s0, %s423
      %p425 = scmp.lt.s32.totalorder %s26, 1
      %s426 = scalar_select %p425, %s26, 1
      %s427 = smul.addr %s426, 4
      %s428 = smul.addr %s427, 8
      %s429 = scalar_lea.vmem %s1, %s428
      %p430 = scmp.lt.s32.totalorder %s26, 1
      %s431 = scalar_select %p430, %s26, 1
      %s432 = smul.addr %s431, 4
      %s433 = smul.addr %s432, 8
      %s434 = scalar_lea.vmem %s2, %s433
      %p435 = scmp.lt.s32.totalorder %s26, 1
      %s436 = scalar_select %p435, %s26, 1
      %p437 = scmp.lt.s32.totalorder %s27, 0
      %s438 = scalar_select %p437, %s27, 0
      %s439 = sadd.s32 %s438, %s436
      %s440 = smul.addr %s439, 4
      %s441 = scalar_lea.vmem %s11, %s440
      %v443 = vld [vmem:[%s424] sm:$0x3]
      %v444 = vld [vmem:[%s429] sm:$0xff]
      %v445 = vld [vmem:[%s429 + $0x8] sm:$0xff]
      %v446 = vld [vmem:[%s429 + $0x10] sm:$0xff]
      %v447 = vld [vmem:[%s429 + $0x18] sm:$0xff]
      %v448 = vld [vmem:[%s434] sm:$0xff]
      %v449 = vld [vmem:[%s434 + $0x8] sm:$0xff]
      %v450 = vld [vmem:[%s434 + $0x10] sm:$0xff]
      %v451 = vld [vmem:[%s434 + $0x18] sm:$0xff]
      %v452 = vld [vmem:[%s3] sm:$0xff]
      %v453 = vld [vmem:[%s3 + $0x8] sm:$0xff]
      %v454 = vld [vmem:[%s3 + $0x10] sm:$0xff]
      %v455 = vld [vmem:[%s3 + $0x18] sm:$0xff]
      %457 = vset.pattern.permute.xlu0 0
      %458 = vperm.xlu0 %457, %v452
      %v459 = vpop.permute.xlu0 %458
      %462 = vset.pattern.permute.xlu0 0
      %463 = vperm.xlu0 %462, %v453
      %v464 = vpop.permute.xlu0 %463
      %467 = vset.pattern.permute.xlu0 0
      %468 = vperm.xlu0 %467, %v454
      %v469 = vpop.permute.xlu0 %468
      %472 = vset.pattern.permute.xlu0 0
      %473 = vperm.xlu0 %472, %v455
      %v474 = vpop.permute.xlu0 %473
      %v476 = vlaneseq
      %v477 = vshrl.u32 %v476, 7
      %v478 = vsub.s32 0, %v477
      %v479 = vrot.slane %v443, %v478
      %v480 = vmul.f32 %v459, %v479
      %v481 = vmul.f32 %v464, %v479
      %v482 = vmul.f32 %v469, %v479
      %v483 = vmul.f32 %v474, %v479
      %484 = vset.pattern.permute.xlu0 1
      %485 = vperm.xlu0 %484, %v452
      %v486 = vpop.permute.xlu0 %485
      %488 = vset.pattern.permute.xlu0 1
      %489 = vperm.xlu0 %488, %v453
      %v490 = vpop.permute.xlu0 %489
      %492 = vset.pattern.permute.xlu0 1
      %493 = vperm.xlu0 %492, %v454
      %v494 = vpop.permute.xlu0 %493
      %496 = vset.pattern.permute.xlu0 1
      %497 = vperm.xlu0 %496, %v455
      %v498 = vpop.permute.xlu0 %497
      %v500 = vlaneseq
      %v501 = vshrl.u32 %v500, 7
      %v502 = vsub.s32 1, %v501
      %v503 = vrot.slane %v443, %v502
      %v504 = vmul.f32 %v486, %v503
      %v505 = vmul.f32 %v490, %v503
      %v506 = vmul.f32 %v494, %v503
      %v507 = vmul.f32 %v498, %v503
      %v508 = vadd.f32 %v480, %v504
      %v509 = vadd.f32 %v481, %v505
      %v510 = vadd.f32 %v482, %v506
      %v511 = vadd.f32 %v483, %v507
      %513 = vset.pattern.permute.xlu0 0
      %514 = vperm.xlu0 %513, %v444
      %v515 = vpop.permute.xlu0 %514
      %518 = vset.pattern.permute.xlu0 0
      %519 = vperm.xlu0 %518, %v445
      %v520 = vpop.permute.xlu0 %519
      %523 = vset.pattern.permute.xlu0 0
      %524 = vperm.xlu0 %523, %v446
      %v525 = vpop.permute.xlu0 %524
      %528 = vset.pattern.permute.xlu0 0
      %529 = vperm.xlu0 %528, %v447
      %v530 = vpop.permute.xlu0 %529
      %v532 = vadd.f32 %v508, %v515
      %v533 = vadd.f32 %v509, %v520
      %v534 = vadd.f32 %v510, %v525
      %v535 = vadd.f32 %v511, %v530
      %v536 = vmax.f32 %v532, 0.0
      %v537 = vmax.f32 %v533, 0.0
      %v538 = vmax.f32 %v534, 0.0
      %v539 = vmax.f32 %v535, 0.0
      %v540 = vld [vmem:[%s4] sm:$0xf]
      %v541 = vld [vmem:[%s4 + $0x4] sm:$0xf]
      %v542 = vpack.c.bf16 %v537, %v536
      %v543 = vpack.c.bf16 %v539, %v538
      %v544 = vld [vmem:[%s5] sm:$0xff]
      %v545 = vld [vmem:[%s5 + $0x8] sm:$0xff]
      %547 = vset.pattern.permute.xlu0 0
      %548 = vperm.xlu0 %547, %v544
      %v549 = vpop.permute.xlu0 %548
      %552 = vset.pattern.permute.xlu0 0
      %553 = vperm.xlu0 %552, %v545
      %v554 = vpop.permute.xlu0 %553
      %v558 = vunpack.c.l.b16 %v540
      %v559 = vunpack.c.l.b16 %v541
      %v560 = vpack.c.b16 %v559, %v558
      %vm561 = vcmask 261120
      %v563 = vsel %vm561, %v560, 0
      %565 = vmatprep.subr.bf16.mxu0 0
      %566 = vmatpush1.bf16.msra.mxu0 0
      %567 = vmatprep.subr.bf16.mxu0 0
      %568 = vmatpush1.bf16.msra.mxu0 0
      %569 = vmatprep.subr.bf16.mxu0 0
      %570 = vmatpush1.bf16.msra.mxu0 0
      %571 = vmatprep.subr.bf16.mxu0 0
      %572 = vmatpush1.bf16.msra.mxu0 0
      %573 = vmatprep.subr.bf16.mxu0 0
      %574 = vmatpush1.bf16.msra.mxu0 0
      %575 = vmatprep.subr.bf16.mxu0 0
      %576 = vmatpush1.bf16.msra.mxu0 0
      %577 = vmatprep.subr.bf16.mxu0 0
      %578 = vmatpush1.bf16.msra.mxu0 %v543
      %579 = vmatprep.subr.bf16.mxu0 0
      %580 = vmatpush1.bf16.msra.mxu0 %v542
      %581 = vmatprep.subr.bf16.mxu0 0
      %582 = vmatpush2.bf16.msra.mxu0 0
      %583 = vmatprep.subr.bf16.mxu0 0
      %584 = vmatpush2.bf16.msra.mxu0 0
      %585 = vmatprep.subr.bf16.mxu0 0
      %586 = vmatpush2.bf16.msra.mxu0 0
      %587 = vmatprep.subr.bf16.mxu0 0
      %588 = vmatpush2.bf16.msra.mxu0 0
      %589 = vmatprep.subr.bf16.mxu0 0
      %590 = vmatpush2.bf16.msra.mxu0 0
      %591 = vmatprep.subr.bf16.mxu0 0
      %592 = vmatpush2.bf16.msra.mxu0 0
      %593 = vmatprep.subr.bf16.mxu0 0
      %594 = vmatpush2.bf16.msra.mxu0 0
      %595 = vmatprep.subr.bf16.mxu0 0
      %596 = vmatpush2.bf16.msra.mxu0 0
      %597 = vmatprep.mubr.bf16.mxu0 0
      %598 = vmatmul.mubr.bf16.gmra.mxu0 %v563
      %v599 = vpop.f32.mrf.mxu0
      %v600 = vadd.f32 %v549, %v599
      %v601 = vpop.f32.mrf.mxu0
      %v602 = vpop.f32.mrf.mxu0
      %v603 = vadd.f32 %v554, %v602
      %v604 = vpop.f32.mrf.mxu0
      %605 = vdwg.mxu0
      %v606 = vmax.f32 %v600, 0.0
      %v607 = vmax.f32 %v603, 0.0
      %v608 = vld [vmem:[%s6] sm:$0xf]
      %v609 = vld [vmem:[%s6 + $0x4] sm:$0xf]
      %v610 = vld [vmem:[%s6 + $0x8] sm:$0xf]
      %v611 = vld [vmem:[%s6 + $0xc] sm:$0xf]
      %v612 = vpack.c.bf16 %v607, %v606
      %614 = vset.pattern.permute.xlu0 0
      %615 = vperm.xlu0 %614, %v448
      %v616 = vpop.permute.xlu0 %615
      %619 = vset.pattern.permute.xlu0 0
      %620 = vperm.xlu0 %619, %v449
      %v621 = vpop.permute.xlu0 %620
      %624 = vset.pattern.permute.xlu0 0
      %625 = vperm.xlu0 %624, %v450
      %v626 = vpop.permute.xlu0 %625
      %629 = vset.pattern.permute.xlu0 0
      %630 = vperm.xlu0 %629, %v451
      %v631 = vpop.permute.xlu0 %630
      %v637 = vunpack.c.l.b16 %v608
      %v638 = vunpack.c.l.b16 %v609
      %v639 = vunpack.c.l.b16 %v610
      %v640 = vunpack.c.l.b16 %v611
      %v641 = vpack.c.b16 %v638, %v637
      %v642 = vpack.c.b16 %v640, %v639
      %vm643 = vcmask 130048
      %v645 = vsel %vm643, %v641, 0
      %v648 = vsel %vm643, %v642, 0
      %650 = vmatprep.subr.bf16.mxu0 0
      %651 = vmatpush1.bf16.msra.mxu0 0
      %652 = vmatprep.subr.bf16.mxu0 0
      %653 = vmatpush1.bf16.msra.mxu0 0
      %654 = vmatprep.subr.bf16.mxu0 0
      %655 = vmatpush1.bf16.msra.mxu0 0
      %656 = vmatprep.subr.bf16.mxu0 0
      %657 = vmatpush1.bf16.msra.mxu0 0
      %658 = vmatprep.subr.bf16.mxu0 0
      %659 = vmatpush1.bf16.msra.mxu0 0
      %660 = vmatprep.subr.bf16.mxu0 0
      %661 = vmatpush1.bf16.msra.mxu0 0
      %662 = vmatprep.subr.bf16.mxu0 0
      %663 = vmatpush1.bf16.msra.mxu0 0
      %664 = vmatprep.subr.bf16.mxu0 0
      %665 = vmatpush1.bf16.msra.mxu0 %v612
      %666 = vmatprep.subr.bf16.mxu0 0
      %667 = vmatpush2.bf16.msra.mxu0 0
      %668 = vmatprep.subr.bf16.mxu0 0
      %669 = vmatpush2.bf16.msra.mxu0 0
      %670 = vmatprep.subr.bf16.mxu0 0
      %671 = vmatpush2.bf16.msra.mxu0 0
      %672 = vmatprep.subr.bf16.mxu0 0
      %673 = vmatpush2.bf16.msra.mxu0 0
      %674 = vmatprep.subr.bf16.mxu0 0
      %675 = vmatpush2.bf16.msra.mxu0 0
      %676 = vmatprep.subr.bf16.mxu0 0
      %677 = vmatpush2.bf16.msra.mxu0 0
      %678 = vmatprep.subr.bf16.mxu0 0
      %679 = vmatpush2.bf16.msra.mxu0 0
      %680 = vmatprep.subr.bf16.mxu0 0
      %681 = vmatpush2.bf16.msra.mxu0 0
      %682 = vmatprep.mubr.bf16.mxu0 0
      %683 = vmatmul.mubr.bf16.gmra.mxu0 %v645
      %v684 = vpop.f32.mrf.mxu0
      %v685 = vadd.f32 %v616, %v684
      %v686 = vpop.f32.mrf.mxu0
      %v687 = vpop.f32.mrf.mxu0
      %v688 = vadd.f32 %v621, %v687
      %v689 = vpop.f32.mrf.mxu0
      %690 = vmatprep.mubr.bf16.mxu0 0
      %691 = vmatmul.mubr.bf16.gmra.mxu0 %v648
      %v692 = vpop.f32.mrf.mxu0
      %v693 = vadd.f32 %v626, %v692
      %v694 = vpop.f32.mrf.mxu0
      %v695 = vpop.f32.mrf.mxu0
      %v696 = vadd.f32 %v631, %v695
      %v697 = vpop.f32.mrf.mxu0
      %698 = vdwg.mxu0
      %v699 = vmax.f32 %v685, 0.0
      %v700 = vmax.f32 %v688, 0.0
      %v701 = vmax.f32 %v693, 0.0
      %v702 = vmax.f32 %v696, 0.0
      %v703 = vld [vmem:[%s7] sm:$0xf]
      %v704 = vld [vmem:[%s7 + $0x4] sm:$0xf]
      %v705 = vpack.c.bf16 %v700, %v699
      %v706 = vpack.c.bf16 %v702, %v701
      %v707 = vld [vmem:[%s8] sm:$0xff]
      %v708 = vld [vmem:[%s8 + $0x8] sm:$0xff]
      %710 = vset.pattern.permute.xlu0 0
      %711 = vperm.xlu0 %710, %v707
      %v712 = vpop.permute.xlu0 %711
      %715 = vset.pattern.permute.xlu0 0
      %716 = vperm.xlu0 %715, %v708
      %v717 = vpop.permute.xlu0 %716
      %v721 = vunpack.c.l.b16 %v703
      %v722 = vunpack.c.l.b16 %v704
      %v723 = vpack.c.b16 %v722, %v721
      %v725 = vsel %vm561, %v723, 0
      %727 = vmatprep.subr.bf16.mxu0 0
      %728 = vmatpush1.bf16.msra.mxu0 0
      %729 = vmatprep.subr.bf16.mxu0 0
      %730 = vmatpush1.bf16.msra.mxu0 0
      %731 = vmatprep.subr.bf16.mxu0 0
      %732 = vmatpush1.bf16.msra.mxu0 0
      %733 = vmatprep.subr.bf16.mxu0 0
      %734 = vmatpush1.bf16.msra.mxu0 0
      %735 = vmatprep.subr.bf16.mxu0 0
      %736 = vmatpush1.bf16.msra.mxu0 0
      %737 = vmatprep.subr.bf16.mxu0 0
      %738 = vmatpush1.bf16.msra.mxu0 0
      %739 = vmatprep.subr.bf16.mxu0 0
      %740 = vmatpush1.bf16.msra.mxu0 %v706
      %741 = vmatprep.subr.bf16.mxu0 0
      %742 = vmatpush1.bf16.msra.mxu0 %v705
      %743 = vmatprep.subr.bf16.mxu0 0
      %744 = vmatpush2.bf16.msra.mxu0 0
      %745 = vmatprep.subr.bf16.mxu0 0
      %746 = vmatpush2.bf16.msra.mxu0 0
      %747 = vmatprep.subr.bf16.mxu0 0
      %748 = vmatpush2.bf16.msra.mxu0 0
      %749 = vmatprep.subr.bf16.mxu0 0
      %750 = vmatpush2.bf16.msra.mxu0 0
      %751 = vmatprep.subr.bf16.mxu0 0
      %752 = vmatpush2.bf16.msra.mxu0 0
      %753 = vmatprep.subr.bf16.mxu0 0
      %754 = vmatpush2.bf16.msra.mxu0 0
      %755 = vmatprep.subr.bf16.mxu0 0
      %756 = vmatpush2.bf16.msra.mxu0 0
      %757 = vmatprep.subr.bf16.mxu0 0
      %758 = vmatpush2.bf16.msra.mxu0 0
      %759 = vmatprep.mubr.bf16.mxu0 0
      %760 = vmatmul.mubr.bf16.gmra.mxu0 %v725
      %v761 = vpop.f32.mrf.mxu0
      %v762 = vadd.f32 %v712, %v761
      %v763 = vpop.f32.mrf.mxu0
      %v764 = vpop.f32.mrf.mxu0
      %v765 = vadd.f32 %v717, %v764
      %v766 = vpop.f32.mrf.mxu0
      %767 = vdwg.mxu0
      %v768 = vmax.f32 %v762, 0.0
      %v769 = vmax.f32 %v765, 0.0
      %v770 = vld [vmem:[%s9] sm:$0x3]
      %v771 = vpack.c.bf16 %v769, %v768
      %v772 = vld [vmem:[%s10] sm:$0x7]
      %774 = vset.pattern.permute.xlu0 0
      %775 = vperm.xlu0 %774, %v772
      %v776 = vpop.permute.xlu0 %775
      %v779 = vsel %vm643, %v770, 0
      %781 = vmatprep.subr.bf16.mxu0 0
      %782 = vmatpush1.bf16.msra.mxu0 0
      %783 = vmatprep.subr.bf16.mxu0 0
      %784 = vmatpush1.bf16.msra.mxu0 0
      %785 = vmatprep.subr.bf16.mxu0 0
      %786 = vmatpush1.bf16.msra.mxu0 0
      %787 = vmatprep.subr.bf16.mxu0 0
      %788 = vmatpush1.bf16.msra.mxu0 0
      %789 = vmatprep.subr.bf16.mxu0 0
      %790 = vmatpush1.bf16.msra.mxu0 0
      %791 = vmatprep.subr.bf16.mxu0 0
      %792 = vmatpush1.bf16.msra.mxu0 0
      %793 = vmatprep.subr.bf16.mxu0 0
      %794 = vmatpush1.bf16.msra.mxu0 0
      %795 = vmatprep.subr.bf16.mxu0 0
      %796 = vmatpush1.bf16.msra.mxu0 %v771
      %797 = vmatprep.subr.bf16.mxu0 0
      %798 = vmatpush2.bf16.msra.mxu0 0
      %799 = vmatprep.subr.bf16.mxu0 0
      %800 = vmatpush2.bf16.msra.mxu0 0
      %801 = vmatprep.subr.bf16.mxu0 0
      %802 = vmatpush2.bf16.msra.mxu0 0
      %803 = vmatprep.subr.bf16.mxu0 0
      %804 = vmatpush2.bf16.msra.mxu0 0
      %805 = vmatprep.subr.bf16.mxu0 0
      %806 = vmatpush2.bf16.msra.mxu0 0
      %807 = vmatprep.subr.bf16.mxu0 0
      %808 = vmatpush2.bf16.msra.mxu0 0
      %809 = vmatprep.subr.bf16.mxu0 0
      %810 = vmatpush2.bf16.msra.mxu0 0
      %811 = vmatprep.subr.bf16.mxu0 0
      %812 = vmatpush2.bf16.msra.mxu0 0
      %813 = vmatprep.mubr.bf16.mxu0 0
      %814 = vmatmul.mubr.bf16.gmra.mxu0 %v779
      %v815 = vpop.f32.mrf.mxu0
      %v816 = vadd.f32 %v776, %v815
      %v817 = vpop.f32.mrf.mxu0
      %v818 = vpop.f32.mrf.mxu0
      %v819 = vpop.f32.mrf.mxu0
      %820 = vdwg.mxu0
      %821 = vst [vmem:[%s441] sm:$0x7] %v816
      %p822 = scmp.lt.s32.totalorder %s26, 1
      %s823 = scalar_select %p822, %s26, 1
      %p824 = scmp.lt.s32.totalorder %s27, 0
      %s825 = scalar_select %p824, %s27, 0
      %s826 = sadd.s32 %s825, %s823
      %s827 = smul.addr %s826, 4
      %s828 = scalar_lea.vmem %s11, %s827
      // Predicated region
      $region65: #{tpu_custom_call.1} parent=63 // pred_check
        %p829 = pneg %p300
      $region66: #{tpu_custom_call.1} parent=63 // pred_check_branch
        %831 = sbr.rel (%p829) target = $region68
      $region67: #{tpu_custom_call.1} parent=63 // pred_region
        _
      $region68: #{tpu_custom_call.1} parent=63 // pred_fallthru
        _
    $region64: #{tpu_custom_call.1} parent=5 // pred_fallthru
      _
    %p832 = scmp.le.s32.totalorder 2, %s17
    // Predicated region
    $region69: #{tpu_custom_call.1} parent=5 // pred_check
      %p833 = pneg %p832
    $region70: #{tpu_custom_call.1} parent=5 // pred_check_branch
      %835 = sbr.rel (%p833) target = $region72
    $region71: #{tpu_custom_call.1} parent=5 // pred_region
      %s836 = ssub.s32 %s17, 2
      // Predicated region
      $region73: #{tpu_custom_call.1} parent=71 // pred_check
        %p837 = pneg %p306
      $region74: #{tpu_custom_call.1} parent=71 // pred_check_branch
        %839 = sbr.rel (%p837) target = $region76
      $region75: #{tpu_custom_call.1} parent=71 // pred_region
        %p840 = scmp.lt.s32.totalorder %s28, 1
        %s841 = scalar_select %p840, %s28, 1
        %p842 = scmp.lt.s32.totalorder %s29, 0
        %s843 = scalar_select %p842, %s29, 0
        %s844 = sadd.s32 %s843, %s841
        %s845 = smul.addr %s844, 4
        %s846 = scalar_lea.vmem %s11, %s845
      $region76: #{tpu_custom_call.1} parent=71 // pred_fallthru
        _
    $region72: #{tpu_custom_call.1} parent=5 // pred_fallthru
      _
  $region6: #{tpu_custom_call.1} parent=0 // loop_footer
    %s21 = sadd.s32 1, %s17
  $region7: #{tpu_custom_call.1} parent=0 // loop_footer_branch
    %16 = sbr.rel target = $region3
  $region8: #{tpu_custom_call.1} parent=0 // loop_exit
    _

</llo_original>
